<compile_context>
chip_gen: v6e
topology: v6e:2x2x1
jax: 0.10.0
libtpu: 0.0.40
codegen_flags: <defaults>
</compile_context>

<pallas_src>
import jax
import jax.numpy as jnp
from jax.experimental import pallas as pl
from jax.experimental.pallas import tpu as pltpu


def _round_up(x, m):
    return ((x + m - 1) // m) * m


def _gated_fusion_kernel(h_ref, x_ref, wh_ref, wx_ref, whx_ref, b_ref, o_ref):
    h = h_ref[...]
    x = x_ref[...]
    hx = h * x  # native dtype; fed straight to the MXU

    # Three K=H matmuls, single f32 accumulator (MXU accumulates in f32).
    logits = jnp.dot(h, wh_ref[...], preferred_element_type=jnp.float32)
    logits = logits + jnp.dot(x, wx_ref[...], preferred_element_type=jnp.float32)
    logits = logits + jnp.dot(hx, whx_ref[...], preferred_element_type=jnp.float32)
    logits = logits + b_ref[...]  # bias already f32

    z = jax.nn.sigmoid(logits)

    # out = (1 - z) * h + z * x  ==  h + z * (x - h)
    h32 = h.astype(jnp.float32)
    x32 = x.astype(jnp.float32)
    out = h32 + z * (x32 - h32)
    o_ref[...] = out.astype(o_ref.dtype)


def gated_fusion(h_state, inp, weight, bias, *, tile_rows=1024):
    """h_state, inp: (..., H); weight: (4H, H) [in-features major]; bias: (H,)."""
    assert h_state.shape == inp.shape
    H = h_state.shape[-1]
    assert weight.shape == (4 * H, H)
    assert bias.shape == (H,)

    dtype = h_state.dtype
    lead_shape = h_state.shape[:-1]
    rows = 1
    for d in lead_shape:
        rows *= d

    # ---- fold the (h - x) feature group into the weights -------------------
    w_h = weight[0 * H:1 * H] + weight[3 * H:4 * H]   # multiplies h
    w_x = weight[1 * H:2 * H] - weight[3 * H:4 * H]   # multiplies x
    w_hx = weight[2 * H:3 * H]                        # multiplies h*x

    # ---- pad hidden/lane axis to a multiple of 128 (lane-dense stores) -----
    Hp = _round_up(max(H, 128), 128)
    pad_h = Hp - H

    def _pad_w(w):
        return jnp.pad(w, ((0, pad_h), (0, pad_h))).astype(dtype)

    w_h_p, w_x_p, w_hx_p = _pad_w(w_h), _pad_w(w_x), _pad_w(w_hx)
    b_p = jnp.pad(bias.astype(jnp.float32), (0, pad_h)).reshape(1, Hp)

    # ---- choose the row tile (sublane aligned, VMEM-budgeted) --------------
    itemsize = jnp.dtype(dtype).itemsize
    bytes_per_row = Hp * itemsize
    # h, x, out streams are double-buffered -> 6 live row-tiles; keep them
    # under ~12 MiB so the config also fits v7x's smaller VMEM with headroom.
    max_tm = max(16, (12 * 1024 * 1024) // (6 * bytes_per_row))
    tm = min(tile_rows, max_tm)
    tm = max(16, (tm // 16) * 16)          # multiple of 16 sublanes (bf16-safe)
    tm = min(tm, _round_up(rows, 16))      # don't exceed the (padded) row count

    rows_p = _round_up(rows, tm)
    pad_rows = rows_p - rows

    h2 = h_state.reshape(rows, H)
    x2 = inp.reshape(rows, H)
    if pad_rows or pad_h:
        h2 = jnp.pad(h2, ((0, pad_rows), (0, pad_h)))
        x2 = jnp.pad(x2, ((0, pad_rows), (0, pad_h)))

    grid = (rows_p // tm,)

    out = pl.pallas_call(
        _gated_fusion_kernel,
        out_shape=jax.ShapeDtypeStruct((rows_p, Hp), dtype),
        grid_spec=pltpu.PrefetchScalarGridSpec(
            num_scalar_prefetch=0,
            grid=grid,
            in_specs=[
                pl.BlockSpec((tm, Hp), lambda i: (i, 0)),   # h  (streamed)
                pl.BlockSpec((tm, Hp), lambda i: (i, 0)),   # x  (streamed)
                pl.BlockSpec((Hp, Hp), lambda i: (0, 0)),   # Wh' (resident)
                pl.BlockSpec((Hp, Hp), lambda i: (0, 0)),   # Wx' (resident)
                pl.BlockSpec((Hp, Hp), lambda i: (0, 0)),   # Whx (resident)
                pl.BlockSpec((1, Hp), lambda i: (0, 0)),    # bias (resident)
            ],
            out_specs=pl.BlockSpec((tm, Hp), lambda i: (i, 0)),
        ),
        compiler_params=pltpu.CompilerParams(
            dimension_semantics=("parallel",),  # shards row tiles on v7x's 2 TCs
        ),
    )(h2, x2, w_h_p, w_x_p, w_hx_p, b_p)

    out = out[:rows, :H]
    return out.reshape(*lead_shape, H)


def _reference(h_state, inp, weight, bias):
    feat = jnp.concatenate([h_state, inp, h_state * inp, h_state - inp], axis=-1)
    z = jax.nn.sigmoid(feat.astype(jnp.float32) @ weight.astype(jnp.float32)
                       + bias.astype(jnp.float32))
    return ((1.0 - z) * h_state + z * inp).astype(h_state.dtype)


if __name__ == "__main__":
    key = jax.random.PRNGKey(0)
    batch, seq, hidden = 2, 8, 32

    k_h, k_x, k_w, k_b = jax.random.split(key, 4)
    h_state = jax.random.normal(k_h, (batch, seq, hidden), dtype=jnp.float32)
    inp = jax.random.normal(k_x, (batch, seq, hidden), dtype=jnp.float32)

    # Deterministic Linear(4H -> H) init, mimicking PyTorch's uniform bounds.
    fan_in = 4 * hidden
    bound = 1.0 / (fan_in ** 0.5)
    # Stored as (in_features, out_features) = (4H, H) for row-major matmul.
    weight = jax.random.uniform(k_w, (4 * hidden, hidden), dtype=jnp.float32,
                                minval=-bound, maxval=bound)
    bias = jax.random.uniform(k_b, (hidden,), dtype=jnp.float32,
                              minval=-bound, maxval=bound)

    out = gated_fusion(h_state, inp, weight, bias)
    jax.block_until_ready(out)

    ref = _reference(h_state, inp, weight, bias)
    assert out.shape == (batch, seq, hidden)
    assert jnp.allclose(out, ref, atol=1e-5, rtol=1e-5), "mismatch vs reference"

    print("KERNEL_OK")
</pallas_src>

<mosaic_0001>
module attributes {stable_mosaic.version = 11 : i64} {
  func.func @_gated_fusion_kernel(%arg0: i32, %arg1: memref<16x128xf32, #tpu.memory_space<vmem>>, %arg2: memref<16x128xf32, #tpu.memory_space<vmem>>, %arg3: memref<128x128xf32, #tpu.memory_space<vmem>>, %arg4: memref<128x128xf32, #tpu.memory_space<vmem>>, %arg5: memref<128x128xf32, #tpu.memory_space<vmem>>, %arg6: memref<1x128xf32, #tpu.memory_space<vmem>>, %arg7: memref<16x128xf32, #tpu.memory_space<vmem>>) attributes {dimension_semantics = [#tpu.dimension_semantics<parallel>], iteration_bounds = array<i64: 1>, scalar_prefetch = 0 : i64, scratch_operands = 0 : i64, tpu.core_type = #tpu.core_type<tc>, window_params = [{transform_indices = @transform_0, window_bounds = array<i64: 16, 128>}, {transform_indices = @transform_1, window_bounds = array<i64: 16, 128>}, {pipeline_mode = #tpu.pipeline_mode<synchronous>, transform_indices = @transform_2, window_bounds = array<i64: 128, 128>}, {pipeline_mode = #tpu.pipeline_mode<synchronous>, transform_indices = @transform_3, window_bounds = array<i64: 128, 128>}, {pipeline_mode = #tpu.pipeline_mode<synchronous>, transform_indices = @transform_4, window_bounds = array<i64: 128, 128>}, {pipeline_mode = #tpu.pipeline_mode<synchronous>, transform_indices = @transform_5, window_bounds = array<i64: 1, 128>}, {transform_indices = @transform_6, window_bounds = array<i64: 16, 128>}]} {
    %c0 = arith.constant 0 : index
    %c0_0 = arith.constant 0 : index
    %0 = vector.load %arg1[%c0, %c0_0] : memref<16x128xf32, #tpu.memory_space<vmem>>, vector<16x128xf32>
    %c0_1 = arith.constant 0 : index
    %c0_2 = arith.constant 0 : index
    %1 = vector.load %arg2[%c0_1, %c0_2] : memref<16x128xf32, #tpu.memory_space<vmem>>, vector<16x128xf32>
    %2 = arith.mulf %0, %1 : vector<16x128xf32>
    %c0_3 = arith.constant 0 : index
    %c0_4 = arith.constant 0 : index
    %3 = vector.load %arg3[%c0_3, %c0_4] : memref<128x128xf32, #tpu.memory_space<vmem>>, vector<128x128xf32>
    %cst = arith.constant dense<0.000000e+00> : vector<16x128xf32>
    %4 = tpu.matmul %0, %3, %cst {dimension_numbers = #tpu.dot_dimension_numbers<[1], [0], [0], [1], [0, 0, 1, 1], [], []>} : vector<16x128xf32>, vector<128x128xf32>, vector<16x128xf32> -> vector<16x128xf32>
    %c0_5 = arith.constant 0 : index
    %c0_6 = arith.constant 0 : index
    %5 = vector.load %arg4[%c0_5, %c0_6] : memref<128x128xf32, #tpu.memory_space<vmem>>, vector<128x128xf32>
    %cst_7 = arith.constant dense<0.000000e+00> : vector<16x128xf32>
    %6 = tpu.matmul %1, %5, %cst_7 {dimension_numbers = #tpu.dot_dimension_numbers<[1], [0], [0], [1], [0, 0, 1, 1], [], []>} : vector<16x128xf32>, vector<128x128xf32>, vector<16x128xf32> -> vector<16x128xf32>
    %7 = arith.addf %4, %6 : vector<16x128xf32>
    %c0_8 = arith.constant 0 : index
    %c0_9 = arith.constant 0 : index
    %8 = vector.load %arg5[%c0_8, %c0_9] : memref<128x128xf32, #tpu.memory_space<vmem>>, vector<128x128xf32>
    %cst_10 = arith.constant dense<0.000000e+00> : vector<16x128xf32>
    %9 = tpu.matmul %2, %8, %cst_10 {dimension_numbers = #tpu.dot_dimension_numbers<[1], [0], [0], [1], [0, 0, 1, 1], [], []>} : vector<16x128xf32>, vector<128x128xf32>, vector<16x128xf32> -> vector<16x128xf32>
    %10 = arith.addf %7, %9 : vector<16x128xf32>
    %c0_11 = arith.constant 0 : index
    %c0_12 = arith.constant 0 : index
    %11 = vector.load %arg6[%c0_11, %c0_12] : memref<1x128xf32, #tpu.memory_space<vmem>>, vector<1x128xf32>
    %12 = vector.broadcast %11 : vector<1x128xf32> to vector<16x128xf32>
    %13 = arith.addf %10, %12 : vector<16x128xf32>
    %14 = arith.negf %13 : vector<16x128xf32>
    %15 = math.exp %14 : vector<16x128xf32>
    %cst_13 = arith.constant 1.000000e+00 : f32
    %16 = vector.broadcast %cst_13 : f32 to vector<16x128xf32>
    %17 = arith.addf %16, %15 : vector<16x128xf32>
    %18 = arith.divf %16, %17 : vector<16x128xf32>
    %19 = arith.subf %1, %0 : vector<16x128xf32>
    %20 = arith.mulf %18, %19 : vector<16x128xf32>
    %21 = arith.addf %0, %20 : vector<16x128xf32>
    %c0_14 = arith.constant 0 : index
    %c0_15 = arith.constant 0 : index
    %22 = vector.load %arg7[%c0_14, %c0_15] : memref<16x128xf32, #tpu.memory_space<vmem>>, vector<16x128xf32>
    tpu.vector_store %arg7[%c0_14, %c0_15], %21 {strides = array<i32>} : memref<16x128xf32, #tpu.memory_space<vmem>>, vector<16x128xf32>,
    return
  }
  func.func @transform_0(%arg0: i32) -> (i32, i32) {
    %c0_i32 = arith.constant 0 : i32
    %c0_i32_0 = arith.constant 0 : i32
    return %arg0, %c0_i32 : i32, i32
  }
  func.func @transform_1(%arg0: i32) -> (i32, i32) {
    %c0_i32 = arith.constant 0 : i32
    %c0_i32_0 = arith.constant 0 : i32
    return %arg0, %c0_i32 : i32, i32
  }
  func.func @transform_2(%arg0: i32) -> (i32, i32) {
    %c0_i32 = arith.constant 0 : i32
    %c0_i32_0 = arith.constant 0 : i32
    %c0_i32_1 = arith.constant 0 : i32
    return %c0_i32, %c0_i32_0 : i32, i32
  }
  func.func @transform_3(%arg0: i32) -> (i32, i32) {
    %c0_i32 = arith.constant 0 : i32
    %c0_i32_0 = arith.constant 0 : i32
    %c0_i32_1 = arith.constant 0 : i32
    return %c0_i32, %c0_i32_0 : i32, i32
  }
  func.func @transform_4(%arg0: i32) -> (i32, i32) {
    %c0_i32 = arith.constant 0 : i32
    %c0_i32_0 = arith.constant 0 : i32
    %c0_i32_1 = arith.constant 0 : i32
    return %c0_i32, %c0_i32_0 : i32, i32
  }
  func.func @transform_5(%arg0: i32) -> (i32, i32) {
    %c0_i32 = arith.constant 0 : i32
    %c0_i32_0 = arith.constant 0 : i32
    %c0_i32_1 = arith.constant 0 : i32
    return %c0_i32, %c0_i32_0 : i32, i32
  }
  func.func @transform_6(%arg0: i32) -> (i32, i32) {
    %c0_i32 = arith.constant 0 : i32
    %c0_i32_0 = arith.constant 0 : i32
    return %arg0, %c0_i32 : i32, i32
  }
}

</mosaic_0001>

<llo_original>
// kernel: tpu_custom_call.1
$region0: #{tpu_custom_call.1}
  #allocation0 [shape = 'u32[]', space=smem, size = 0x4, offset = 0x4, fixed_abs, tag = 'smem constant byte address 0x4 - core index']
  #allocation1 [shape = 'u32[144,128]{1,0:T(1,128)}', space=vmem, size = 0x12000, scoped, tag = 'internal scratch']
  %s0 = inlined_call_operand.hbm [shape: f32[16,128], index: 0, kind: input, shape index: {}]
  %s1 = inlined_call_operand.hbm [shape: f32[16,128], index: 1, kind: input, shape index: {}]
  %s2 = inlined_call_operand.hbm [shape: f32[128,128], index: 2, kind: input, shape index: {}]
  %s3 = inlined_call_operand.hbm [shape: f32[128,128], index: 3, kind: input, shape index: {}]
  %s4 = inlined_call_operand.hbm [shape: f32[128,128], index: 4, kind: input, shape index: {}]
  %s5 = inlined_call_operand.vmem [shape: f32[1,128], index: 5, kind: input, shape index: {}]
  %s6 = inlined_call_operand.hbm [shape: f32[16,128], index: 6, kind: output, shape index: {}]
  %s7 = sld [smem:[#allocation0]]
  $region54: #{tpu_custom_call.1} parent=0
    _
  %s9 = ssub.s32 1, %s7
  %s10 = scalar_select 0, %s9, %s7
  $region1: #{tpu_custom_call.1} parent=0
    #allocation2 [shape = 'u8[8192]{0}', space=vmem, size = 0x2000, scoped, tag = 'input window, operand 0, single buffered']
    #allocation3 [shape = 's32[1]{0}', space=sflag, size = 0x4, scoped, tag = 'scoped memory for tpu_custom_call.1']
    #allocation4 [shape = 's32[1]{0}', space=sflag, size = 0x4, scoped, tag = 'scoped memory for tpu_custom_call.1']
    #allocation5 [shape = 'u8[8192]{0}', space=vmem, size = 0x2000, scoped, tag = 'input window, operand 1, single buffered']
    #allocation6 [shape = 's32[1]{0}', space=sflag, size = 0x4, scoped, tag = 'scoped memory for tpu_custom_call.1']
    #allocation7 [shape = 'u8[65536]{0}', space=vmem, size = 0x10000, scoped, tag = 'input window, operand 2, single buffered']
    #allocation8 [shape = 'u8[65536]{0}', space=vmem, size = 0x10000, scoped, tag = 'input window, operand 3, single buffered']
    #allocation9 [shape = 's32[1]{0}', space=sflag, size = 0x4, scoped, tag = 'scoped memory for tpu_custom_call.1']
    #allocation10 [shape = 'u8[65536]{0}', space=vmem, size = 0x10000, scoped, tag = 'input window, operand 4, single buffered']
    #allocation11 [shape = 'u8[8192]{0}', space=vmem, size = 0x2000, scoped, tag = 'output window, operand 0, single buffered']
    %11 = vsyncpa [#allocation3], 0
    %12 = vsyncpa [#allocation6], 0
    %13 = vsyncpa [#allocation9], 0
    %14 = vsyncpa [#allocation4], 0
    // Predicated region
    $region2: #{tpu_custom_call.1} parent=1 // pred_check
      _
    $region3: #{tpu_custom_call.1} parent=1 // pred_check_branch
      %16 = sbr.rel (0) target = $region5
    $region4: #{tpu_custom_call.1} parent=1 // pred_region
      %s18 = ssub.s32 256, 256
      %19 = vsyncadd [#allocation3], %s18
      %s20 = sshll.u32 [#allocation2], 4
      %s21 = int_to_ptr.vmem [resolvable:$true] %s20
      %26 = dma.hbm_to_vmem [thread:$0]  %s0, 256, %s21, [#allocation3], 128, 128, 8
    $region5: #{tpu_custom_call.1} parent=1 // pred_fallthru
      _
    // Predicated region
    $region6: #{tpu_custom_call.1} parent=1 // pred_check
      _
    $region7: #{tpu_custom_call.1} parent=1 // pred_check_branch
      %28 = sbr.rel (0) target = $region9
    $region8: #{tpu_custom_call.1} parent=1 // pred_region
      %s30 = ssub.s32 256, 256
      %31 = vsyncadd [#allocation6], %s30
      %s32 = sshll.u32 [#allocation5], 4
      %s33 = int_to_ptr.vmem [resolvable:$true] %s32
      %38 = dma.hbm_to_vmem [thread:$0]  %s1, 256, %s33, [#allocation6], 128, 128, 8
    $region9: #{tpu_custom_call.1} parent=1 // pred_fallthru
      _
    // Predicated region
    $region10: #{tpu_custom_call.1} parent=1 // pred_check
      _
    $region11: #{tpu_custom_call.1} parent=1 // pred_check_branch
      %40 = sbr.rel (0) target = $region13
    $region12: #{tpu_custom_call.1} parent=1 // pred_region
      %s42 = ssub.s32 2048, 2048
      %43 = vsyncadd [#allocation6], %s42
      %s44 = sshll.u32 [#allocation7], 4
      %s45 = int_to_ptr.vmem [resolvable:$true] %s44
      %50 = dma.hbm_to_vmem [thread:$0]  %s2, 2048, %s45, [#allocation6], 128, 128, 8
    $region13: #{tpu_custom_call.1} parent=1 // pred_fallthru
      _
    // Predicated region
    $region14: #{tpu_custom_call.1} parent=1 // pred_check
      _
    $region15: #{tpu_custom_call.1} parent=1 // pred_check_branch
      %52 = sbr.rel (0) target = $region17
    $region16: #{tpu_custom_call.1} parent=1 // pred_region
      %s54 = ssub.s32 2048, 2048
      %55 = vsyncadd [#allocation9], %s54
      %s56 = sshll.u32 [#allocation8], 4
      %s57 = int_to_ptr.vmem [resolvable:$true] %s56
      %62 = dma.hbm_to_vmem [thread:$0]  %s3, 2048, %s57, [#allocation9], 128, 128, 8
    $region17: #{tpu_custom_call.1} parent=1 // pred_fallthru
      _
    // Predicated region
    $region18: #{tpu_custom_call.1} parent=1 // pred_check
      _
    $region19: #{tpu_custom_call.1} parent=1 // pred_check_branch
      %64 = sbr.rel (0) target = $region21
    $region20: #{tpu_custom_call.1} parent=1 // pred_region
      %s66 = ssub.s32 2048, 2048
      %67 = vsyncadd [#allocation9], %s66
      %s68 = sshll.u32 [#allocation10], 4
      %s69 = int_to_ptr.vmem [resolvable:$true] %s68
      %74 = dma.hbm_to_vmem [thread:$0]  %s4, 2048, %s69, [#allocation9], 128, 128, 8
    $region21: #{tpu_custom_call.1} parent=1 // pred_fallthru
      _
    // Predicated region
    $region22: #{tpu_custom_call.1} parent=1 // pred_check
      _
    $region23: #{tpu_custom_call.1} parent=1 // pred_check_branch
      %76 = sbr.rel (0) target = $region25
    $region24: #{tpu_custom_call.1} parent=1 // pred_region
      _
    $region25: #{tpu_custom_call.1} parent=1 // pred_fallthru
      _
    // Predicated region
    $region26: #{tpu_custom_call.1} parent=1 // pred_check
      _
    $region27: #{tpu_custom_call.1} parent=1 // pred_check_branch
      %78 = sbr.rel (0) target = $region29
    $region28: #{tpu_custom_call.1} parent=1 // pred_region
      %79 = dma.done [#allocation3], 256
    $region29: #{tpu_custom_call.1} parent=1 // pred_fallthru
      _
    // Predicated region
    $region30: #{tpu_custom_call.1} parent=1 // pred_check
      _
    $region31: #{tpu_custom_call.1} parent=1 // pred_check_branch
      %81 = sbr.rel (0) target = $region33
    $region32: #{tpu_custom_call.1} parent=1 // pred_region
      %82 = dma.done [#allocation6], 256
    $region33: #{tpu_custom_call.1} parent=1 // pred_fallthru
      _
    // Predicated region
    $region34: #{tpu_custom_call.1} parent=1 // pred_check
      _
    $region35: #{tpu_custom_call.1} parent=1 // pred_check_branch
      %84 = sbr.rel (0) target = $region37
    $region36: #{tpu_custom_call.1} parent=1 // pred_region
      %85 = dma.done [#allocation6], 2048
    $region37: #{tpu_custom_call.1} parent=1 // pred_fallthru
      _
    // Predicated region
    $region38: #{tpu_custom_call.1} parent=1 // pred_check
      _
    $region39: #{tpu_custom_call.1} parent=1 // pred_check_branch
      %87 = sbr.rel (0) target = $region41
    $region40: #{tpu_custom_call.1} parent=1 // pred_region
      %88 = dma.done [#allocation9], 2048
    $region41: #{tpu_custom_call.1} parent=1 // pred_fallthru
      _
    // Predicated region
    $region42: #{tpu_custom_call.1} parent=1 // pred_check
      _
    $region43: #{tpu_custom_call.1} parent=1 // pred_check_branch
      %90 = sbr.rel (0) target = $region45
    $region44: #{tpu_custom_call.1} parent=1 // pred_region
      %91 = dma.done [#allocation9], 2048
    $region45: #{tpu_custom_call.1} parent=1 // pred_fallthru
      _
    %v92 = vld [vmem:[#allocation2] sm:$0xff]
    %v93 = vld [vmem:[#allocation2 + $0x8] sm:$0xff]
    %v94 = vld [vmem:[#allocation5] sm:$0xff]
    %v95 = vld [vmem:[#allocation5 + $0x8] sm:$0xff]
    %v96 = vmul.f32 %v92, %v94
    %v97 = vmul.f32 %v93, %v95
    %v98 = vld [vmem:[#allocation7] sm:$0xff]
    %v99 = vld [vmem:[#allocation7 + $0x8] sm:$0xff]
    %v100 = vld [vmem:[#allocation7 + $0x10] sm:$0xff]
    %v101 = vld [vmem:[#allocation7 + $0x18] sm:$0xff]
    %v102 = vld [vmem:[#allocation7 + $0x20] sm:$0xff]
    %v103 = vld [vmem:[#allocation7 + $0x28] sm:$0xff]
    %v104 = vld [vmem:[#allocation7 + $0x30] sm:$0xff]
    %v105 = vld [vmem:[#allocation7 + $0x38] sm:$0xff]
    %v106 = vld [vmem:[#allocation7 + $0x40] sm:$0xff]
    %v107 = vld [vmem:[#allocation7 + $0x48] sm:$0xff]
    %v108 = vld [vmem:[#allocation7 + $0x50] sm:$0xff]
    %v109 = vld [vmem:[#allocation7 + $0x58] sm:$0xff]
    %v110 = vld [vmem:[#allocation7 + $0x60] sm:$0xff]
    %v111 = vld [vmem:[#allocation7 + $0x68] sm:$0xff]
    %v112 = vld [vmem:[#allocation7 + $0x70] sm:$0xff]
    %v113 = vld [vmem:[#allocation7 + $0x78] sm:$0xff]
    %v114 = vld [vmem:[#allocation8] sm:$0xff]
    %v115 = vld [vmem:[#allocation8 + $0x8] sm:$0xff]
    %v116 = vld [vmem:[#allocation8 + $0x10] sm:$0xff]
    %v117 = vld [vmem:[#allocation8 + $0x18] sm:$0xff]
    %v118 = vld [vmem:[#allocation8 + $0x20] sm:$0xff]
    %v119 = vld [vmem:[#allocation8 + $0x28] sm:$0xff]
    %v120 = vld [vmem:[#allocation8 + $0x30] sm:$0xff]
    %v121 = vld [vmem:[#allocation8 + $0x38] sm:$0xff]
    %v122 = vld [vmem:[#allocation8 + $0x40] sm:$0xff]
    %v123 = vld [vmem:[#allocation8 + $0x48] sm:$0xff]
    %v124 = vld [vmem:[#allocation8 + $0x50] sm:$0xff]
    %v125 = vld [vmem:[#allocation8 + $0x58] sm:$0xff]
    %v126 = vld [vmem:[#allocation8 + $0x60] sm:$0xff]
    %v127 = vld [vmem:[#allocation8 + $0x68] sm:$0xff]
    %v128 = vld [vmem:[#allocation8 + $0x70] sm:$0xff]
    %v129 = vld [vmem:[#allocation8 + $0x78] sm:$0xff]
    %130 = vmatprep.subr.mxu0 0.0
    %131 = vmatpush1.msra.mxu0 %v129
    %132 = vmatprep.subr.mxu0 0.0
    %133 = vmatpush1.msra.mxu0 %v128
    %134 = vmatprep.subr.mxu0 0.0
    %135 = vmatpush1.msra.mxu0 %v127
    %136 = vmatprep.subr.mxu0 0.0
    %137 = vmatpush1.msra.mxu0 %v126
    %138 = vmatprep.subr.mxu0 0.0
    %139 = vmatpush1.msra.mxu0 %v125
    %140 = vmatprep.subr.mxu0 0.0
    %141 = vmatpush1.msra.mxu0 %v124
    %142 = vmatprep.subr.mxu0 0.0
    %143 = vmatpush1.msra.mxu0 %v123
    %144 = vmatprep.subr.mxu0 0.0
    %145 = vmatpush1.msra.mxu0 %v122
    %146 = vmatprep.subr.mxu0 0.0
    %147 = vmatpush1.msra.mxu0 %v121
    %148 = vmatprep.subr.mxu0 0.0
    %149 = vmatpush1.msra.mxu0 %v120
    %150 = vmatprep.subr.mxu0 0.0
    %151 = vmatpush1.msra.mxu0 %v119
    %152 = vmatprep.subr.mxu0 0.0
    %153 = vmatpush1.msra.mxu0 %v118
    %154 = vmatprep.subr.mxu0 0.0
    %155 = vmatpush1.msra.mxu0 %v117
    %156 = vmatprep.subr.mxu0 0.0
    %157 = vmatpush1.msra.mxu0 %v116
    %158 = vmatprep.subr.mxu0 0.0
    %159 = vmatpush1.msra.mxu0 %v115
    %160 = vmatprep.subr.mxu0 0.0
    %161 = vmatpush1.msra.mxu0 %v114
    %162 = vmatprep.subr.mxu0 0.0
    %163 = vmatpush2.msra.mxu0 0.0
    %164 = vmatprep.subr.mxu0 0.0
    %165 = vmatpush2.msra.mxu0 0.0
    %166 = vmatprep.subr.mxu0 0.0
    %167 = vmatpush2.msra.mxu0 0.0
    %168 = vmatprep.subr.mxu0 0.0
    %169 = vmatpush2.msra.mxu0 0.0
    %170 = vmatprep.subr.mxu0 0.0
    %171 = vmatpush2.msra.mxu0 0.0
    %172 = vmatprep.subr.mxu0 0.0
    %173 = vmatpush2.msra.mxu0 0.0
    %174 = vmatprep.subr.mxu0 0.0
    %175 = vmatpush2.msra.mxu0 0.0
    %176 = vmatprep.subr.mxu0 0.0
    %177 = vmatpush2.msra.mxu0 0.0
    %178 = vmatprep.subr.mxu0 0.0
    %179 = vmatpush2.msra.mxu0 0.0
    %180 = vmatprep.subr.mxu0 0.0
    %181 = vmatpush2.msra.mxu0 0.0
    %182 = vmatprep.subr.mxu0 0.0
    %183 = vmatpush2.msra.mxu0 0.0
    %184 = vmatprep.subr.mxu0 0.0
    %185 = vmatpush2.msra.mxu0 0.0
    %186 = vmatprep.subr.mxu0 0.0
    %187 = vmatpush2.msra.mxu0 0.0
    %188 = vmatprep.subr.mxu0 0.0
    %189 = vmatpush2.msra.mxu0 0.0
    %190 = vmatprep.subr.mxu0 0.0
    %191 = vmatpush2.msra.mxu0 0.0
    %192 = vmatprep.subr.mxu0 0.0
    %193 = vmatpush2.msra.mxu0 0.0
    %194 = vmatprep.mubr.f32.mxu0 0.0
    %195 = vmatmul.mubr.f32.gmra.mxu0 %v94
    %v196 = vpop.f32.mrf.mxu0
    %v197 = vadd.f32 0.0, %v196
    %v198 = vpop.f32.mrf.mxu0
    %199 = vmatprep.mubr.f32.mxu0 0.0
    %200 = vmatmul.mubr.f32.gmra.mxu0 %v95
    %v201 = vpop.f32.mrf.mxu0
    %v202 = vadd.f32 0.0, %v201
    %v203 = vpop.f32.mrf.mxu0
    %204 = vdwg.mxu0
    %205 = vmatprep.subr.mxu0 0.0
    %206 = vmatpush1.msra.mxu0 %v113
    %207 = vmatprep.subr.mxu0 0.0
    %208 = vmatpush1.msra.mxu0 %v112
    %209 = vmatprep.subr.mxu0 0.0
    %210 = vmatpush1.msra.mxu0 %v111
    %211 = vmatprep.subr.mxu0 0.0
    %212 = vmatpush1.msra.mxu0 %v110
    %213 = vmatprep.subr.mxu0 0.0
    %214 = vmatpush1.msra.mxu0 %v109
    %215 = vmatprep.subr.mxu0 0.0
    %216 = vmatpush1.msra.mxu0 %v108
    %217 = vmatprep.subr.mxu0 0.0
    %218 = vmatpush1.msra.mxu0 %v107
    %219 = vmatprep.subr.mxu0 0.0
    %220 = vmatpush1.msra.mxu0 %v106
    %221 = vmatprep.subr.mxu0 0.0
    %222 = vmatpush1.msra.mxu0 %v105
    %223 = vmatprep.subr.mxu0 0.0
    %224 = vmatpush1.msra.mxu0 %v104
    %225 = vmatprep.subr.mxu0 0.0
    %226 = vmatpush1.msra.mxu0 %v103
    %227 = vmatprep.subr.mxu0 0.0
    %228 = vmatpush1.msra.mxu0 %v102
    %229 = vmatprep.subr.mxu0 0.0
    %230 = vmatpush1.msra.mxu0 %v101
    %231 = vmatprep.subr.mxu0 0.0
    %232 = vmatpush1.msra.mxu0 %v100
    %233 = vmatprep.subr.mxu0 0.0
    %234 = vmatpush1.msra.mxu0 %v99
    %235 = vmatprep.subr.mxu0 0.0
    %236 = vmatpush1.msra.mxu0 %v98
    %237 = vmatprep.subr.mxu0 0.0
    %238 = vmatpush2.msra.mxu0 0.0
    %239 = vmatprep.subr.mxu0 0.0
    %240 = vmatpush2.msra.mxu0 0.0
    %241 = vmatprep.subr.mxu0 0.0
    %242 = vmatpush2.msra.mxu0 0.0
    %243 = vmatprep.subr.mxu0 0.0
    %244 = vmatpush2.msra.mxu0 0.0
    %245 = vmatprep.subr.mxu0 0.0
    %246 = vmatpush2.msra.mxu0 0.0
    %247 = vmatprep.subr.mxu0 0.0
    %248 = vmatpush2.msra.mxu0 0.0
    %249 = vmatprep.subr.mxu0 0.0
    %250 = vmatpush2.msra.mxu0 0.0
    %251 = vmatprep.subr.mxu0 0.0
    %252 = vmatpush2.msra.mxu0 0.0
    %253 = vmatprep.subr.mxu0 0.0
    %254 = vmatpush2.msra.mxu0 0.0
    %255 = vmatprep.subr.mxu0 0.0
    %256 = vmatpush2.msra.mxu0 0.0
    %257 = vmatprep.subr.mxu0 0.0
    %258 = vmatpush2.msra.mxu0 0.0
    %259 = vmatprep.subr.mxu0 0.0
    %260 = vmatpush2.msra.mxu0 0.0
    %261 = vmatprep.subr.mxu0 0.0
    %262 = vmatpush2.msra.mxu0 0.0
    %263 = vmatprep.subr.mxu0 0.0
    %264 = vmatpush2.msra.mxu0 0.0
    %265 = vmatprep.subr.mxu0 0.0
    %266 = vmatpush2.msra.mxu0 0.0
    %267 = vmatprep.subr.mxu0 0.0
    %268 = vmatpush2.msra.mxu0 0.0
    %269 = vmatprep.mubr.f32.mxu0 0.0
    %270 = vmatmul.mubr.f32.gmra.mxu0 %v92
    %v271 = vpop.f32.mrf.mxu0
    %v272 = vadd.f32 %v197, %v271
    %v273 = vpop.f32.mrf.mxu0
    %274 = vmatprep.mubr.f32.mxu0 0.0
    %275 = vmatmul.mubr.f32.gmra.mxu0 %v93
    %v276 = vpop.f32.mrf.mxu0
    %v277 = vadd.f32 %v202, %v276
    %v278 = vpop.f32.mrf.mxu0
    %279 = vdwg.mxu0
    %v280 = vld [vmem:[#allocation10] sm:$0xff]
    %v281 = vld [vmem:[#allocation10 + $0x8] sm:$0xff]
    %v282 = vld [vmem:[#allocation10 + $0x10] sm:$0xff]
    %v283 = vld [vmem:[#allocation10 + $0x18] sm:$0xff]
    %v284 = vld [vmem:[#allocation10 + $0x20] sm:$0xff]
    %v285 = vld [vmem:[#allocation10 + $0x28] sm:$0xff]
    %v286 = vld [vmem:[#allocation10 + $0x30] sm:$0xff]
    %v287 = vld [vmem:[#allocation10 + $0x38] sm:$0xff]
    %v288 = vld [vmem:[#allocation10 + $0x40] sm:$0xff]
    %v289 = vld [vmem:[#allocation10 + $0x48] sm:$0xff]
    %v290 = vld [vmem:[#allocation10 + $0x50] sm:$0xff]
    %v291 = vld [vmem:[#allocation10 + $0x58] sm:$0xff]
    %v292 = vld [vmem:[#allocation10 + $0x60] sm:$0xff]
    %v293 = vld [vmem:[#allocation10 + $0x68] sm:$0xff]
    %v294 = vld [vmem:[#allocation10 + $0x70] sm:$0xff]
    %v295 = vld [vmem:[#allocation10 + $0x78] sm:$0xff]
    %296 = vmatprep.subr.mxu0 0.0
    %297 = vmatpush1.msra.mxu0 %v295
    %298 = vmatprep.subr.mxu0 0.0
    %299 = vmatpush1.msra.mxu0 %v294
    %300 = vmatprep.subr.mxu0 0.0
    %301 = vmatpush1.msra.mxu0 %v293
    %302 = vmatprep.subr.mxu0 0.0
    %303 = vmatpush1.msra.mxu0 %v292
    %304 = vmatprep.subr.mxu0 0.0
    %305 = vmatpush1.msra.mxu0 %v291
    %306 = vmatprep.subr.mxu0 0.0
    %307 = vmatpush1.msra.mxu0 %v290
    %308 = vmatprep.subr.mxu0 0.0
    %309 = vmatpush1.msra.mxu0 %v289
    %310 = vmatprep.subr.mxu0 0.0
    %311 = vmatpush1.msra.mxu0 %v288
    %312 = vmatprep.subr.mxu0 0.0
    %313 = vmatpush1.msra.mxu0 %v287
    %314 = vmatprep.subr.mxu0 0.0
    %315 = vmatpush1.msra.mxu0 %v286
    %316 = vmatprep.subr.mxu0 0.0
    %317 = vmatpush1.msra.mxu0 %v285
    %318 = vmatprep.subr.mxu0 0.0
    %319 = vmatpush1.msra.mxu0 %v284
    %320 = vmatprep.subr.mxu0 0.0
    %321 = vmatpush1.msra.mxu0 %v283
    %322 = vmatprep.subr.mxu0 0.0
    %323 = vmatpush1.msra.mxu0 %v282
    %324 = vmatprep.subr.mxu0 0.0
    %325 = vmatpush1.msra.mxu0 %v281
    %326 = vmatprep.subr.mxu0 0.0
    %327 = vmatpush1.msra.mxu0 %v280
    %328 = vmatprep.subr.mxu0 0.0
    %329 = vmatpush2.msra.mxu0 0.0
    %330 = vmatprep.subr.mxu0 0.0
    %331 = vmatpush2.msra.mxu0 0.0
    %332 = vmatprep.subr.mxu0 0.0
    %333 = vmatpush2.msra.mxu0 0.0
    %334 = vmatprep.subr.mxu0 0.0
    %335 = vmatpush2.msra.mxu0 0.0
    %336 = vmatprep.subr.mxu0 0.0
    %337 = vmatpush2.msra.mxu0 0.0
    %338 = vmatprep.subr.mxu0 0.0
    %339 = vmatpush2.msra.mxu0 0.0
    %340 = vmatprep.subr.mxu0 0.0
    %341 = vmatpush2.msra.mxu0 0.0
    %342 = vmatprep.subr.mxu0 0.0
    %343 = vmatpush2.msra.mxu0 0.0
    %344 = vmatprep.subr.mxu0 0.0
    %345 = vmatpush2.msra.mxu0 0.0
    %346 = vmatprep.subr.mxu0 0.0
    %347 = vmatpush2.msra.mxu0 0.0
    %348 = vmatprep.subr.mxu0 0.0
    %349 = vmatpush2.msra.mxu0 0.0
    %350 = vmatprep.subr.mxu0 0.0
    %351 = vmatpush2.msra.mxu0 0.0
    %352 = vmatprep.subr.mxu0 0.0
    %353 = vmatpush2.msra.mxu0 0.0
    %354 = vmatprep.subr.mxu0 0.0
    %355 = vmatpush2.msra.mxu0 0.0
    %356 = vmatprep.subr.mxu0 0.0
    %357 = vmatpush2.msra.mxu0 0.0
    %358 = vmatprep.subr.mxu0 0.0
    %359 = vmatpush2.msra.mxu0 0.0
    %360 = vmatprep.mubr.f32.mxu0 0.0
    %361 = vmatmul.mubr.f32.gmra.mxu0 %v96
    %v362 = vpop.f32.mrf.mxu0
    %v363 = vadd.f32 0.0, %v362
    %v364 = vpop.f32.mrf.mxu0
    %365 = vmatprep.mubr.f32.mxu0 0.0
    %366 = vmatmul.mubr.f32.gmra.mxu0 %v97
    %v367 = vpop.f32.mrf.mxu0
    %v368 = vadd.f32 0.0, %v367
    %v369 = vpop.f32.mrf.mxu0
    %370 = vdwg.mxu0
    %v371 = vadd.f32 %v272, %v363
    %v372 = vadd.f32 %v277, %v368
    %v373 = vld [vmem:[%s5] sm:$0x1]
    %v375 = vlaneseq
    %v376 = vshrl.u32 %v375, 7
    %v377 = vsub.s32 0, %v376
    %v378 = vrot.slane %v373, %v377
    %v380 = vadd.f32 %v371, %v378
    %v381 = vadd.f32 %v372, %v378
    %v382 = vxor.u32 %v380, 2147483648
    %v383 = vxor.u32 %v381, 2147483648
    %v384 = vmul.f32 %v382, 1.442695
    %v385 = vpow.pop %v384
    %v386 = vmul.f32 %v383, 1.442695
    %v387 = vpow.pop %v386
    %v388 = vadd.f32 %v385, 1.0
    %v389 = vadd.f32 %v387, 1.0
    %v390 = vrcp.pop %v388
    %v391 = vmul.f32 1.0, %v390
    %v392 = vrcp.pop %v389
    %v393 = vmul.f32 1.0, %v392
    %v394 = vsub.f32 %v94, %v92
    %v395 = vsub.f32 %v95, %v93
    %v396 = vmul.f32 %v391, %v394
    %v397 = vmul.f32 %v393, %v395
    %v398 = vadd.f32 %v92, %v396
    %v399 = vadd.f32 %v93, %v397
    %400 = vst [vmem:[#allocation11] sm:$0xff] %v398
    %401 = vst [vmem:[#allocation11 + $0x8] sm:$0xff] %v399
    // Predicated region
    $region46: #{tpu_custom_call.1} parent=1 // pred_check
      _
    $region47: #{tpu_custom_call.1} parent=1 // pred_check_branch
      %403 = sbr.rel (0) target = $region49
    $region48: #{tpu_custom_call.1} parent=1 // pred_region
      %s405 = ssub.s32 256, 256
      %406 = vsyncadd [#allocation4], %s405
      %s407 = sshll.u32 [#allocation11], 4
      %s408 = int_to_ptr.vmem [resolvable:$true] %s407
      %413 = dma.vmem_to_hbm [thread:$0]  %s408, 256, %s6, [#allocation4], 128, 128, 8
    $region49: #{tpu_custom_call.1} parent=1 // pred_fallthru
      _
    // Predicated region
    $region50: #{tpu_custom_call.1} parent=1 // pred_check
      _
    $region51: #{tpu_custom_call.1} parent=1 // pred_check_branch
      %415 = sbr.rel (0) target = $region53
    $region52: #{tpu_custom_call.1} parent=1 // pred_region
      %416 = dma.done [#allocation4], 256
    $region53: #{tpu_custom_call.1} parent=1 // pred_fallthru
      _
    %417 = vsyncpa [#allocation3], 1
    %418 = vsyncpa [#allocation6], 1
    %419 = vsyncpa [#allocation9], 1
    %420 = vsyncpa [#allocation4], 1

</llo_original>
